<compile_context>
chip_gen: v7x
topology: tpu7x:2x2x1
jax: 0.10.0
libtpu: 0.0.40
codegen_flags: <defaults>
</compile_context>

<pallas_src>
import jax
import jax.numpy as jnp
from jax.experimental import pallas as pl
from jax.experimental.pallas import tpu as pltpu


def _round_up(x, m):
    return ((x + m - 1) // m) * m


def _gcn_hops_kernel(x_ref, a1_ref, a2_ref, o11_ref, o12_ref, o21_ref, o22_ref):
    # x_ref:  (Nb, V, CLT)    a*_ref: (Nb, W, V)    o*_ref: (Nb, W, CLT)
    x = x_ref[...]
    a1 = a1_ref[...]
    a2 = a2_ref[...]

    # support 1: hop 1 and hop 2 (hop-1 result reused in VMEM, no HBM re-read)
    h11 = jnp.einsum("bwv,bvc->bwc", a1, x, preferred_element_type=jnp.float32)
    o11_ref[...] = h11.astype(o11_ref.dtype)
    h12 = jnp.einsum("bwv,bvc->bwc", a1, h11.astype(x.dtype),
                     preferred_element_type=jnp.float32)
    o12_ref[...] = h12.astype(o12_ref.dtype)

    # support 2
    h21 = jnp.einsum("bwv,bvc->bwc", a2, x, preferred_element_type=jnp.float32)
    o21_ref[...] = h21.astype(o21_ref.dtype)
    h22 = jnp.einsum("bwv,bvc->bwc", a2, h21.astype(x.dtype),
                     preferred_element_type=jnp.float32)
    o22_ref[...] = h22.astype(o22_ref.dtype)


def _choose_tiling(N, V, W, CL, itemsize, *, vmem_budget_bytes=12 << 20,
                   min_steps=8, nb_cap=8):
    """Pick (Nb, CL-tile, padded CL).

    Budget per grid step: double-buffered x block + 4 double-buffered hop
    outputs + two small A blocks + 4 f32 intermediates.  The 12 MiB default
    budget stays under v5e's 16 MiB default scoped VMEM and well under v7x's
    64 MiB physical VMEM even double-buffered.
    """
    cl128 = _round_up(max(CL, 1), 128)

    # largest Nb <= nb_cap dividing N (bigger per-step DMAs at small shapes)
    nb = 1
    for cand in range(min(N, nb_cap), 0, -1):
        if N % cand == 0:
            nb = cand
            break

    # VMEM bytes per lane of the CL tile for one grid step
    per_lane = nb * (V + 4 * W) * 2 * itemsize + nb * W * 4 * 4
    clt = (vmem_budget_bytes // max(per_lane, 1)) // 128 * 128
    clt = int(max(128, min(clt, cl128)))

    # Ensure enough sequential grid steps to pipeline DMAs / feed both v7x TCs.
    def n_steps(t):
        return (N // nb) * pl.cdiv(cl128, t)

    while clt > 128 and n_steps(clt) < min_steps:
        clt = max(128, ((clt // 2) // 128) * 128)

    cl_pad = pl.cdiv(cl128, clt) * clt
    return nb, clt, cl_pad


def gcn_dynamic_hops_folded(x_flat, adp, adpT, *, vmem_budget_bytes=12 << 20,
                            min_steps=8, nb_cap=8, interpret=False):
    """Two-support, two-hop diffusion chain on the lane-dense folded activation.

    x_flat: (N, V, C*L)   adp / adpT: (N, W, V) with W == V.
    Returns (adp@x, adp@adp@x, adpT@x, adpT@adpT@x), each (N, W, C*L), same
    dtype as x_flat, f32 accumulation.  Callers that keep the activation in
    this folded layout across the layer pay zero relayout cost.
    """
    N, V, CL = x_flat.shape
    Na, W, Va = adp.shape
    assert adpT.shape == adp.shape, (adp.shape, adpT.shape)
    assert Na == N and Va == V and W == V, (x_flat.shape, adp.shape)

    itemsize = jnp.dtype(x_flat.dtype).itemsize
    nb, clt, cl_pad = _choose_tiling(
        N, V, W, CL, itemsize, vmem_budget_bytes=vmem_budget_bytes,
        min_steps=min_steps, nb_cap=nb_cap)

    if cl_pad != CL:  # lane-pad so every output store is an unmasked, full vst
        x_flat = jnp.pad(x_flat, ((0, 0), (0, 0), (0, cl_pad - CL)))

    grid = (N // nb, cl_pad // clt)

    x_spec = pl.BlockSpec((nb, V, clt), lambda n, j: (n, 0, j))
    a_spec = pl.BlockSpec((nb, W, V), lambda n, j: (n, 0, 0))   # const over j
    o_spec = pl.BlockSpec((nb, W, clt), lambda n, j: (n, 0, j))

    # Advisory cost for XLA's scheduler (memory-bound einsum chain).
    flops = 2 * 4 * N * W * V * CL
    bytes_accessed = itemsize * (N * V * CL + 4 * N * W * CL + 2 * N * W * V)

    # Generation-aware scoped-VMEM limit (cap below v7x's 64 MiB physical).
    step_io = nb * clt * (V + 4 * W) * itemsize
    step_a = 2 * nb * W * V * itemsize
    step_tmp = 4 * nb * W * clt * 4
    est = 2 * (step_io + step_a) + step_tmp
    vmem_limit = int(min(48 << 20, max(24 << 20, 2 * est)))

    outs = pl.pallas_call(
        _gcn_hops_kernel,
        out_shape=tuple(jax.ShapeDtypeStruct((N, W, cl_pad), x_flat.dtype)
                        for _ in range(4)),
        grid_spec=pl.GridSpec(
            grid=grid,
            in_specs=[x_spec, a_spec, a_spec],
            out_specs=[o_spec, o_spec, o_spec, o_spec],
        ),
        compiler_params=pltpu.CompilerParams(
            dimension_semantics=("parallel", "parallel"),
            vmem_limit_bytes=vmem_limit,
        ),
        cost_estimate=pl.CostEstimate(flops=flops, transcendentals=0,
                                      bytes_accessed=bytes_accessed),
        interpret=interpret,
    )(x_flat, adp, adpT)

    if cl_pad != CL:
        outs = tuple(o[:, :, :CL] for o in outs)
    return outs


def gcn_dynamic_hops(x, adp, adpT, **kwargs):
    """NCVL-layout convenience wrapper.

    x: (N, C, V, L), adp/adpT: (N, W, V).  Returns the four diffusion hops
    (adp*x, adp^2*x, adpT*x, adpT^2*x), each (N, C, W, L), matching the
    chained torch.einsum('ncvl,nwv->ncwl', ...) calls in gcn_gcnm_dynamic.
    The relayout to/from the lane-dense (N, V, C*L) layout happens once per
    GCN layer here (not once per nconv call).
    """
    N, C, V, L = x.shape
    W = adp.shape[1]
    x_flat = jnp.transpose(x, (0, 2, 1, 3)).reshape(N, V, C * L)
    outs = gcn_dynamic_hops_folded(x_flat, adp, adpT, **kwargs)

    def unfold(o):
        return jnp.transpose(o.reshape(N, W, C, L), (0, 2, 1, 3))

    return tuple(unfold(o) for o in outs)


if __name__ == "__main__":
    key = jax.random.PRNGKey(0)
    kx, k1, k2 = jax.random.split(key, 3)

    # Small shapes consistent with GCNMdynamic: batch N=2,
    # dilation_channels C=32, num_nodes V=W=16, sequence L=16.
    N, C, V, L = 2, 32, 16, 16
    x = jax.random.normal(kx, (N, C, V, L), dtype=jnp.float32)
    # row-normalized adaptive supports, like preprocessing(adj) in the module
    adp = jax.nn.softmax(jax.random.normal(k1, (N, V, V), jnp.float32), axis=-1)
    adpT = jax.nn.softmax(jax.random.normal(k2, (N, V, V), jnp.float32), axis=-1)

    x11, x12, x21, x22 = jax.block_until_ready(gcn_dynamic_hops(x, adp, adpT))

    def nconv_ref(xx, aa):
        return jnp.einsum("ncvl,nwv->ncwl", xx, aa)

    r11 = nconv_ref(x, adp)
    r12 = nconv_ref(r11, adp)
    r21 = nconv_ref(x, adpT)
    r22 = nconv_ref(r21, adpT)
    for got, ref in ((x11, r11), (x12, r12), (x21, r21), (x22, r22)):
        assert got.shape == (N, C, V, L), got.shape
        assert jnp.allclose(got, ref, atol=1e-4, rtol=1e-4), "mismatch vs einsum chain"

    # Ragged sequence length (C*L = 32*13 = 416, not a multiple of 128):
    # exercises the lane-padding path.
    L2 = 13
    x_r = jax.random.normal(kx, (N, C, V, L2), dtype=jnp.float32)
    hr = jax.block_until_ready(gcn_dynamic_hops(x_r, adp, adpT))
    assert hr[1].shape == (N, C, V, L2)
    assert jnp.allclose(hr[1], nconv_ref(nconv_ref(x_r, adp), adp),
                        atol=1e-4, rtol=1e-4), "ragged-CL mismatch"

    # bf16 path (halves HBM traffic on this memory-bound op); f32 accumulation.
    hb = jax.block_until_ready(
        gcn_dynamic_hops(x.astype(jnp.bfloat16), adp.astype(jnp.bfloat16),
                         adpT.astype(jnp.bfloat16)))
    assert hb[0].dtype == jnp.bfloat16 and hb[3].shape == (N, C, V, L)

    print("KERNEL_OK")
</pallas_src>

<mosaic_0001>
module attributes {stable_mosaic.version = 11 : i64} {
  func.func @_gcn_hops_kernel(%arg0: i32, %arg1: i32, %arg2: memref<2x16x128xf32, #tpu.memory_space<vmem>>, %arg3: memref<2x16x16xf32, #tpu.memory_space<vmem>>, %arg4: memref<2x16x16xf32, #tpu.memory_space<vmem>>, %arg5: memref<2x16x128xf32, #tpu.memory_space<vmem>>, %arg6: memref<2x16x128xf32, #tpu.memory_space<vmem>>, %arg7: memref<2x16x128xf32, #tpu.memory_space<vmem>>, %arg8: memref<2x16x128xf32, #tpu.memory_space<vmem>>) attributes {dimension_semantics = [#tpu.dimension_semantics<parallel>, #tpu.dimension_semantics<parallel>], iteration_bounds = array<i64: 1, 4>, scalar_prefetch = 0 : i64, scratch_operands = 0 : i64, tpu.core_type = #tpu.core_type<tc>, window_params = [{transform_indices = @transform_0, window_bounds = array<i64: 2, 16, 128>}, {transform_indices = @transform_1, window_bounds = array<i64: 2, 16, 16>}, {transform_indices = @transform_2, window_bounds = array<i64: 2, 16, 16>}, {transform_indices = @transform_3, window_bounds = array<i64: 2, 16, 128>}, {transform_indices = @transform_4, window_bounds = array<i64: 2, 16, 128>}, {transform_indices = @transform_5, window_bounds = array<i64: 2, 16, 128>}, {transform_indices = @transform_6, window_bounds = array<i64: 2, 16, 128>}]} {
    %c0 = arith.constant 0 : index
    %c0_0 = arith.constant 0 : index
    %c0_1 = arith.constant 0 : index
    %0 = vector.load %arg2[%c0, %c0_0, %c0_1] : memref<2x16x128xf32, #tpu.memory_space<vmem>>, vector<2x16x128xf32>
    %c0_2 = arith.constant 0 : index
    %c0_3 = arith.constant 0 : index
    %c0_4 = arith.constant 0 : index
    %1 = vector.load %arg3[%c0_2, %c0_3, %c0_4] : memref<2x16x16xf32, #tpu.memory_space<vmem>>, vector<2x16x16xf32>
    %c0_5 = arith.constant 0 : index
    %c0_6 = arith.constant 0 : index
    %c0_7 = arith.constant 0 : index
    %2 = vector.load %arg4[%c0_5, %c0_6, %c0_7] : memref<2x16x16xf32, #tpu.memory_space<vmem>>, vector<2x16x16xf32>
    "tpu.trace_start"() <{level = 10 : i32, message = "bwv,bvc->bwc"}> : () -> ()
    %cst = arith.constant dense<0.000000e+00> : vector<2x16x128xf32>
    %3 = tpu.matmul %1, %0, %cst {dimension_numbers = #tpu.dot_dimension_numbers<[2], [1], [1], [2], [0, 0, 0, 1, 1, 2], [0], [0]>} : vector<2x16x16xf32>, vector<2x16x128xf32>, vector<2x16x128xf32> -> vector<2x16x128xf32>
    "tpu.trace_stop"() : () -> ()
    %c0_8 = arith.constant 0 : index
    %c0_9 = arith.constant 0 : index
    %c0_10 = arith.constant 0 : index
    %4 = vector.load %arg5[%c0_8, %c0_9, %c0_10] : memref<2x16x128xf32, #tpu.memory_space<vmem>>, vector<2x16x128xf32>
    tpu.vector_store %arg5[%c0_8, %c0_9, %c0_10], %3 {strides = array<i32>} : memref<2x16x128xf32, #tpu.memory_space<vmem>>, vector<2x16x128xf32>,
    "tpu.trace_start"() <{level = 10 : i32, message = "bwv,bvc->bwc"}> : () -> ()
    %cst_11 = arith.constant dense<0.000000e+00> : vector<2x16x128xf32>
    %5 = tpu.matmul %1, %3, %cst_11 {dimension_numbers = #tpu.dot_dimension_numbers<[2], [1], [1], [2], [0, 0, 0, 1, 1, 2], [0], [0]>} : vector<2x16x16xf32>, vector<2x16x128xf32>, vector<2x16x128xf32> -> vector<2x16x128xf32>
    "tpu.trace_stop"() : () -> ()
    %c0_12 = arith.constant 0 : index
    %c0_13 = arith.constant 0 : index
    %c0_14 = arith.constant 0 : index
    %6 = vector.load %arg6[%c0_12, %c0_13, %c0_14] : memref<2x16x128xf32, #tpu.memory_space<vmem>>, vector<2x16x128xf32>
    tpu.vector_store %arg6[%c0_12, %c0_13, %c0_14], %5 {strides = array<i32>} : memref<2x16x128xf32, #tpu.memory_space<vmem>>, vector<2x16x128xf32>,
    "tpu.trace_start"() <{level = 10 : i32, message = "bwv,bvc->bwc"}> : () -> ()
    %cst_15 = arith.constant dense<0.000000e+00> : vector<2x16x128xf32>
    %7 = tpu.matmul %2, %0, %cst_15 {dimension_numbers = #tpu.dot_dimension_numbers<[2], [1], [1], [2], [0, 0, 0, 1, 1, 2], [0], [0]>} : vector<2x16x16xf32>, vector<2x16x128xf32>, vector<2x16x128xf32> -> vector<2x16x128xf32>
    "tpu.trace_stop"() : () -> ()
    %c0_16 = arith.constant 0 : index
    %c0_17 = arith.constant 0 : index
    %c0_18 = arith.constant 0 : index
    %8 = vector.load %arg7[%c0_16, %c0_17, %c0_18] : memref<2x16x128xf32, #tpu.memory_space<vmem>>, vector<2x16x128xf32>
    tpu.vector_store %arg7[%c0_16, %c0_17, %c0_18], %7 {strides = array<i32>} : memref<2x16x128xf32, #tpu.memory_space<vmem>>, vector<2x16x128xf32>,
    "tpu.trace_start"() <{level = 10 : i32, message = "bwv,bvc->bwc"}> : () -> ()
    %cst_19 = arith.constant dense<0.000000e+00> : vector<2x16x128xf32>
    %9 = tpu.matmul %2, %7, %cst_19 {dimension_numbers = #tpu.dot_dimension_numbers<[2], [1], [1], [2], [0, 0, 0, 1, 1, 2], [0], [0]>} : vector<2x16x16xf32>, vector<2x16x128xf32>, vector<2x16x128xf32> -> vector<2x16x128xf32>
    "tpu.trace_stop"() : () -> ()
    %c0_20 = arith.constant 0 : index
    %c0_21 = arith.constant 0 : index
    %c0_22 = arith.constant 0 : index
    %10 = vector.load %arg8[%c0_20, %c0_21, %c0_22] : memref<2x16x128xf32, #tpu.memory_space<vmem>>, vector<2x16x128xf32>
    tpu.vector_store %arg8[%c0_20, %c0_21, %c0_22], %9 {strides = array<i32>} : memref<2x16x128xf32, #tpu.memory_space<vmem>>, vector<2x16x128xf32>,
    return
  }
  func.func @transform_0(%arg0: i32, %arg1: i32) -> (i32, i32, i32) {
    %c0_i32 = arith.constant 0 : i32
    %c0_i32_0 = arith.constant 0 : i32
    return %arg0, %c0_i32, %arg1 : i32, i32, i32
  }
  func.func @transform_1(%arg0: i32, %arg1: i32) -> (i32, i32, i32) {
    %c0_i32 = arith.constant 0 : i32
    %c0_i32_0 = arith.constant 0 : i32
    %c0_i32_1 = arith.constant 0 : i32
    return %arg0, %c0_i32, %c0_i32_0 : i32, i32, i32
  }
  func.func @transform_2(%arg0: i32, %arg1: i32) -> (i32, i32, i32) {
    %c0_i32 = arith.constant 0 : i32
    %c0_i32_0 = arith.constant 0 : i32
    %c0_i32_1 = arith.constant 0 : i32
    return %arg0, %c0_i32, %c0_i32_0 : i32, i32, i32
  }
  func.func @transform_3(%arg0: i32, %arg1: i32) -> (i32, i32, i32) {
    %c0_i32 = arith.constant 0 : i32
    %c0_i32_0 = arith.constant 0 : i32
    return %arg0, %c0_i32, %arg1 : i32, i32, i32
  }
  func.func @transform_4(%arg0: i32, %arg1: i32) -> (i32, i32, i32) {
    %c0_i32 = arith.constant 0 : i32
    %c0_i32_0 = arith.constant 0 : i32
    return %arg0, %c0_i32, %arg1 : i32, i32, i32
  }
  func.func @transform_5(%arg0: i32, %arg1: i32) -> (i32, i32, i32) {
    %c0_i32 = arith.constant 0 : i32
    %c0_i32_0 = arith.constant 0 : i32
    return %arg0, %c0_i32, %arg1 : i32, i32, i32
  }
  func.func @transform_6(%arg0: i32, %arg1: i32) -> (i32, i32, i32) {
    %c0_i32 = arith.constant 0 : i32
    %c0_i32_0 = arith.constant 0 : i32
    return %arg0, %c0_i32, %arg1 : i32, i32, i32
  }
}

</mosaic_0001>

<llo_original>
// kernel: tpu_custom_call.1
$region0: #{tpu_custom_call.1}
  #allocation0 [shape = 'u32[]', space=smem, size = 0x4, offset = 0x4, fixed_abs, tag = 'smem constant byte address 0x4 - core index']
  #allocation1 [shape = 'u32[144,128]{1,0:T(1,128)}', space=vmem, size = 0x12000, scoped, tag = 'internal scratch']
  %s0 = inlined_call_operand.hbm [shape: f32[2,16,512], index: 0, kind: input, shape index: {}]
  %s1 = inlined_call_operand.hbm [shape: f32[2,16,16], index: 1, kind: input, shape index: {}]
  %s2 = inlined_call_operand.hbm [shape: f32[2,16,16], index: 2, kind: input, shape index: {}]
  %s3 = inlined_call_operand.hbm [shape: f32[2,16,512], index: 3, kind: output, shape index: {0}]
  %s4 = inlined_call_operand.hbm [shape: f32[2,16,512], index: 4, kind: output, shape index: {1}]
  %s5 = inlined_call_operand.hbm [shape: f32[2,16,512], index: 5, kind: output, shape index: {2}]
  %s6 = inlined_call_operand.hbm [shape: f32[2,16,512], index: 6, kind: output, shape index: {3}]
  %7 = xla_tuple %s3, %s4, %s5, %s6
  %s8 = sld [smem:[#allocation0]]
  $region81: #{tpu_custom_call.1} parent=0
    _
  %s10 = ssub.s32 1, %s8
  %s11 = scalar_select 0, %s10, %s8
  $region1: #{tpu_custom_call.1} parent=0
    #allocation2 [shape = 'u8[32768]{0}', space=vmem, size = 0x8000, scoped, tag = 'input window, operand 0']
    #allocation3 [shape = 's32[2]{0}', space=sflag, size = 0x8, scoped, tag = 'scoped memory for tpu_custom_call.1']
    #allocation4 [shape = 's32[2]{0}', space=sflag, size = 0x8, scoped, tag = 'scoped memory for tpu_custom_call.1']
    #allocation5 [shape = 'u8[16384]{0}', space=vmem, size = 0x4000, scoped, tag = 'input window, operand 1, single buffered']
    #allocation6 [shape = 's32[1]{0}', space=sflag, size = 0x4, scoped, tag = 'scoped memory for tpu_custom_call.1']
    #allocation7 [shape = 'u8[16384]{0}', space=vmem, size = 0x4000, scoped, tag = 'input window, operand 2, single buffered']
    #allocation8 [shape = 'u8[32768]{0}', space=vmem, size = 0x8000, scoped, tag = 'output window, operand 0']
    #allocation9 [shape = 'u8[32768]{0}', space=vmem, size = 0x8000, scoped, tag = 'output window, operand 1']
    #allocation10 [shape = 's32[2]{0}', space=sflag, size = 0x8, scoped, tag = 'scoped memory for tpu_custom_call.1']
    #allocation11 [shape = 'u8[32768]{0}', space=vmem, size = 0x8000, scoped, tag = 'output window, operand 2']
    #allocation12 [shape = 'u8[32768]{0}', space=vmem, size = 0x8000, scoped, tag = 'output window, operand 3']
    #allocation13 [shape = 's32[2]{0}', space=sflag, size = 0x8, scoped, tag = 'scoped memory for tpu_custom_call.1']
    %12 = vsyncpa [#allocation3], 0
    %s13 = scalar_lea.sflag [#allocation3], 1
    %14 = vsyncpa %s13, 0
    %15 = vsyncpa [#allocation6], 0
    %16 = vsyncpa [#allocation4], 0
    %s17 = scalar_lea.sflag [#allocation4], 1
    %18 = vsyncpa %s17, 0
    %19 = vsyncpa [#allocation10], 0
    %s20 = scalar_lea.sflag [#allocation10], 1
    %21 = vsyncpa %s20, 0
    %22 = vsyncpa [#allocation13], 0
    %s23 = scalar_lea.sflag [#allocation13], 1
    %24 = vsyncpa %s23, 0
    loop: start=0, step=1, limit=6
    $region2: #{tpu_custom_call.1} parent=1 // loop_pre_header
      _
    $region3: #{tpu_custom_call.1} parent=1 // loop_header
      %s26 = sphi 0, %s30
      %p27 = scmp.ge.s32.totalorder %s26, 6
      %s33 = sphi 0, %s45
      %s34 = sphi 0, %s41
      %s35 = sphi 0, %s33
      %s36 = sphi 0, %s34
      %s37 = sphi 0, %s35
      %s38 = sphi 0, %s36
      %s50 = sphi 0, %s52
      %s53 = sphi 0, %s50
      %s54 = sphi 0, %s53
      %s70 = sphi 0, %s54
      %s76 = sphi 0, %s78
      %s79 = sphi 0, %s76
      %s80 = sphi 0, %s79
      %s96 = sphi 0, %s80
      %s102 = sphi 0, %s104
      %s105 = sphi 0, %s102
      %s106 = sphi 0, %s105
      %s122 = sphi 0, %s106
      %s130 = sphi 0, %s132
      %s133 = sphi 0, %s130
      %s134 = sphi 0, %s133
      %s150 = sphi 0, %s134
      %s158 = sphi 0, %s160
      %s161 = sphi 0, %s158
      %s162 = sphi 0, %s161
      %s178 = sphi 0, %s162
      %s186 = sphi 0, %s188
      %s189 = sphi 0, %s186
      %s190 = sphi 0, %s189
      %s206 = sphi 0, %s190
      %s214 = sphi 0, %s216
      %s217 = sphi 0, %s214
      %s218 = sphi 0, %s217
      %s234 = sphi 0, %s218
    $region4: #{tpu_custom_call.1} parent=1 // loop_header_branch
      %29 = sbr.rel (%p27) target = $region8
    $region5: #{tpu_custom_call.1} parent=1 // loop_body
      %s31 = ssub.s32 %s26, 1
      %s32 = ssub.s32 %s26, 2
      %s39 = sadd.s32 1, %s34
      %p40 = scmp.ge.s32.totalorder %s39, 4
      %s41 = scalar_select %p40, 0, %s39
      %s42 = sadd.s32 1, %s33
      %s43 = scalar_select %p40, %s42, %s33
      %p44 = scmp.ge.s32.totalorder %s43, 1
      %s45 = scalar_select %p44, 0, %s43
      %s46 = ssub.s32 %s33, %s45
      %s47 = ssub.s32 %s34, %s41
      %s48 = sor.u32 %s46, %s47
      %p49 = scmp.eq.s32.totalorder %s48, 0
      %s51 = sadd.s32 %s50, 1
      %s52 = scalar_select %p49, %s50, %s51
      %p55 = pneg %p49
      %p56 = scmp.eq.s32.totalorder %s26, 3
      %p57 = por %p55, %p56
      %p58 = scmp.ne.s32.totalorder %s50, %s53
      %p59 = scmp.eq.s32.totalorder %s26, 0
      %p60 = por %p58, %p59
      %p61 = scmp.ne.s32.totalorder %s50, %s53
      %p62 = scmp.eq.s32.totalorder %s31, 3
      %p63 = por %p61, %p62
      %p64 = scmp.ne.s32.totalorder %s53, %s54
      %p65 = scmp.eq.s32.totalorder %s31, 0
      %p66 = por %p64, %p65
      %p67 = scmp.ne.s32.totalorder %s53, %s54
      %p68 = scmp.eq.s32.totalorder %s32, 3
      %p69 = por %p67, %p68
      %p71 = scmp.ne.s32.totalorder %s54, %s70
      %p72 = scmp.eq.s32.totalorder %s32, 0
      %p73 = por %p71, %p72
      %s74 = ssub.s32 %s33, %s45
      %p75 = scmp.eq.s32.totalorder %s74, 0
      %s77 = sadd.s32 %s76, 1
      %s78 = scalar_select %p75, %s76, %s77
      %p81 = pneg %p75
      %p82 = scmp.eq.s32.totalorder %s26, 3
      %p83 = por %p81, %p82
      %p84 = scmp.ne.s32.totalorder %s76, %s79
      %p85 = scmp.eq.s32.totalorder %s26, 0
      %p86 = por %p84, %p85
      %p87 = scmp.ne.s32.totalorder %s76, %s79
      %p88 = scmp.eq.s32.totalorder %s31, 3
      %p89 = por %p87, %p88
      %p90 = scmp.ne.s32.totalorder %s79, %s80
      %p91 = scmp.eq.s32.totalorder %s31, 0
      %p92 = por %p90, %p91
      %p93 = scmp.ne.s32.totalorder %s79, %s80
      %p94 = scmp.eq.s32.totalorder %s32, 3
      %p95 = por %p93, %p94
      %p97 = scmp.ne.s32.totalorder %s80, %s96
      %p98 = scmp.eq.s32.totalorder %s32, 0
      %p99 = por %p97, %p98
      %s100 = ssub.s32 %s33, %s45
      %p101 = scmp.eq.s32.totalorder %s100, 0
      %s103 = sadd.s32 %s102, 1
      %s104 = scalar_select %p101, %s102, %s103
      %p107 = pneg %p101
      %p108 = scmp.eq.s32.totalorder %s26, 3
      %p109 = por %p107, %p108
      %p110 = scmp.ne.s32.totalorder %s102, %s105
      %p111 = scmp.eq.s32.totalorder %s26, 0
      %p112 = por %p110, %p111
      %p113 = scmp.ne.s32.totalorder %s102, %s105
      %p114 = scmp.eq.s32.totalorder %s31, 3
      %p115 = por %p113, %p114
      %p116 = scmp.ne.s32.totalorder %s105, %s106
      %p117 = scmp.eq.s32.totalorder %s31, 0
      %p118 = por %p116, %p117
      %p119 = scmp.ne.s32.totalorder %s105, %s106
      %p120 = scmp.eq.s32.totalorder %s32, 3
      %p121 = por %p119, %p120
      %p123 = scmp.ne.s32.totalorder %s106, %s122
      %p124 = scmp.eq.s32.totalorder %s32, 0
      %p125 = por %p123, %p124
      %s126 = ssub.s32 %s33, %s45
      %s127 = ssub.s32 %s34, %s41
      %s128 = sor.u32 %s126, %s127
      %p129 = scmp.eq.s32.totalorder %s128, 0
      %s131 = sadd.s32 %s130, 1
      %s132 = scalar_select %p129, %s130, %s131
      %p135 = pneg %p129
      %p136 = scmp.eq.s32.totalorder %s26, 3
      %p137 = por %p135, %p136
      %p138 = scmp.ne.s32.totalorder %s130, %s133
      %p139 = scmp.eq.s32.totalorder %s26, 0
      %p140 = por %p138, %p139
      %p141 = scmp.ne.s32.totalorder %s130, %s133
      %p142 = scmp.eq.s32.totalorder %s31, 3
      %p143 = por %p141, %p142
      %p144 = scmp.ne.s32.totalorder %s133, %s134
      %p145 = scmp.eq.s32.totalorder %s31, 0
      %p146 = por %p144, %p145
      %p147 = scmp.ne.s32.totalorder %s133, %s134
      %p148 = scmp.eq.s32.totalorder %s32, 3
      %p149 = por %p147, %p148
      %p151 = scmp.ne.s32.totalorder %s134, %s150
      %p152 = scmp.eq.s32.totalorder %s32, 0
      %p153 = por %p151, %p152
      %s154 = ssub.s32 %s33, %s45
      %s155 = ssub.s32 %s34, %s41
      %s156 = sor.u32 %s154, %s155
      %p157 = scmp.eq.s32.totalorder %s156, 0
      %s159 = sadd.s32 %s158, 1
      %s160 = scalar_select %p157, %s158, %s159
      %p163 = pneg %p157
      %p164 = scmp.eq.s32.totalorder %s26, 3
      %p165 = por %p163, %p164
      %p166 = scmp.ne.s32.totalorder %s158, %s161
      %p167 = scmp.eq.s32.totalorder %s26, 0
      %p168 = por %p166, %p167
      %p169 = scmp.ne.s32.totalorder %s158, %s161
      %p170 = scmp.eq.s32.totalorder %s31, 3
      %p171 = por %p169, %p170
      %p172 = scmp.ne.s32.totalorder %s161, %s162
      %p173 = scmp.eq.s32.totalorder %s31, 0
      %p174 = por %p172, %p173
      %p175 = scmp.ne.s32.totalorder %s161, %s162
      %p176 = scmp.eq.s32.totalorder %s32, 3
      %p177 = por %p175, %p176
      %p179 = scmp.ne.s32.totalorder %s162, %s178
      %p180 = scmp.eq.s32.totalorder %s32, 0
      %p181 = por %p179, %p180
      %s182 = ssub.s32 %s33, %s45
      %s183 = ssub.s32 %s34, %s41
      %s184 = sor.u32 %s182, %s183
      %p185 = scmp.eq.s32.totalorder %s184, 0
      %s187 = sadd.s32 %s186, 1
      %s188 = scalar_select %p185, %s186, %s187
      %p191 = pneg %p185
      %p192 = scmp.eq.s32.totalorder %s26, 3
      %p193 = por %p191, %p192
      %p194 = scmp.ne.s32.totalorder %s186, %s189
      %p195 = scmp.eq.s32.totalorder %s26, 0
      %p196 = por %p194, %p195
      %p197 = scmp.ne.s32.totalorder %s186, %s189
      %p198 = scmp.eq.s32.totalorder %s31, 3
      %p199 = por %p197, %p198
      %p200 = scmp.ne.s32.totalorder %s189, %s190
      %p201 = scmp.eq.s32.totalorder %s31, 0
      %p202 = por %p200, %p201
      %p203 = scmp.ne.s32.totalorder %s189, %s190
      %p204 = scmp.eq.s32.totalorder %s32, 3
      %p205 = por %p203, %p204
      %p207 = scmp.ne.s32.totalorder %s190, %s206
      %p208 = scmp.eq.s32.totalorder %s32, 0
      %p209 = por %p207, %p208
      %s210 = ssub.s32 %s33, %s45
      %s211 = ssub.s32 %s34, %s41
      %s212 = sor.u32 %s210, %s211
      %p213 = scmp.eq.s32.totalorder %s212, 0
      %s215 = sadd.s32 %s214, 1
      %s216 = scalar_select %p213, %s214, %s215
      %p219 = pneg %p213
      %p220 = scmp.eq.s32.totalorder %s26, 3
      %p221 = por %p219, %p220
      %p222 = scmp.ne.s32.totalorder %s214, %s217
      %p223 = scmp.eq.s32.totalorder %s26, 0
      %p224 = por %p222, %p223
      %p225 = scmp.ne.s32.totalorder %s214, %s217
      %p226 = scmp.eq.s32.totalorder %s31, 3
      %p227 = por %p225, %p226
      %p228 = scmp.ne.s32.totalorder %s217, %s218
      %p229 = scmp.eq.s32.totalorder %s31, 0
      %p230 = por %p228, %p229
      %p231 = scmp.ne.s32.totalorder %s217, %s218
      %p232 = scmp.eq.s32.totalorder %s32, 3
      %p233 = por %p231, %p232
      %p235 = scmp.ne.s32.totalorder %s218, %s234
      %p236 = scmp.eq.s32.totalorder %s32, 0
      %p237 = por %p235, %p236
      %p238 = scmp.le.s32.totalorder 1, %s26
      %p239 = scmp.lt.s32.totalorder %s26, 5
      %p240 = pnand %p238, %p239
      %p241 = pneg %p240
      // Predicated region
      $region9: #{tpu_custom_call.1} parent=5 // pred_check
        _
      $region10: #{tpu_custom_call.1} parent=5 // pred_check_branch
        %243 = sbr.rel (%p240) target = $region12
      $region11: #{tpu_custom_call.1} parent=5 // pred_region
        %s244 = ssub.s32 %s26, 1
        // Predicated region
        $region13: #{tpu_custom_call.1} parent=11 // pred_check
          %p245 = pneg %p92
        $region14: #{tpu_custom_call.1} parent=11 // pred_check_branch
          %247 = sbr.rel (%p245) target = $region16
        $region15: #{tpu_custom_call.1} parent=11 // pred_region
          %s248 = smul.u32 2, %s35
          %s250 = ssub.s32 512, 512
          %251 = vsyncadd [#allocation6], %s250
          %s252 = smul.addr %s248, 2
          %s253 = smul.addr %s252, 128
          %s254 = scalar_lea.hbm %s1, %s253
          %s255 = sshll.u32 [#allocation5], 4
          %s256 = int_to_ptr.vmem [resolvable:$true] %s255
          %261 = dma.hbm_to_vmem [thread:$0]  %s254, 512, %s256, [#allocation6], 128, 128, 8
        $region16: #{tpu_custom_call.1} parent=11 // pred_fallthru
          _
        // Predicated region
        $region17: #{tpu_custom_call.1} parent=11 // pred_check
          %p262 = pneg %p118
        $region18: #{tpu_custom_call.1} parent=11 // pred_check_branch
          %264 = sbr.rel (%p262) target = $region20
        $region19: #{tpu_custom_call.1} parent=11 // pred_region
          %s265 = smul.u32 2, %s35
          %s267 = ssub.s32 512, 512
          %268 = vsyncadd [#allocation6], %s267
          %s269 = smul.addr %s265, 2
          %s270 = smul.addr %s269, 128
          %s271 = scalar_lea.hbm %s2, %s270
          %s272 = sshll.u32 [#allocation7], 4
          %s273 = int_to_ptr.vmem [resolvable:$true] %s272
          %278 = dma.hbm_to_vmem [thread:$0]  %s271, 512, %s273, [#allocation6], 128, 128, 8
        $region20: #{tpu_custom_call.1} parent=11 // pred_fallthru
          _
      $region12: #{tpu_custom_call.1} parent=5 // pred_fallthru
        _
      %p279 = scmp.lt.s32.totalorder %s26, 4
      // Predicated region
      $region21: #{tpu_custom_call.1} parent=5 // pred_check
        %p280 = pneg %p279
      $region22: #{tpu_custom_call.1} parent=5 // pred_check_branch
        %282 = sbr.rel (%p280) target = $region24
      $region23: #{tpu_custom_call.1} parent=5 // pred_region
        // Predicated region
        $region25: #{tpu_custom_call.1} parent=23 // pred_check
          %p283 = pneg %p60
        $region26: #{tpu_custom_call.1} parent=23 // pred_check_branch
          %285 = sbr.rel (%p283) target = $region28
        $region27: #{tpu_custom_call.1} parent=23 // pred_region
          %s286 = sand.u32 %s50, 1
          %s287 = scalar_lea.sflag [#allocation3], %s286
          %s288 = sand.u32 %s50, 1
          %s289 = smul.addr %s288, 32
          %s290 = scalar_lea.vmem [#allocation2], %s289
          %s291 = smul.u32 2, %s33
          %s293 = ssub.s32 512, 512
          %294 = vsyncadd %s287, %s293
          %s295 = smul.addr %s291, 8
          %s296 = sadd.s32 %s34, %s295
          %s297 = smul.addr %s296, 128
          %s298 = scalar_lea.hbm %s0, %s297
          %s299 = sshll.u32 %s290, 4
          %s300 = int_to_ptr.vmem [resolvable:$true] %s299
          %305 = dma.hbm_to_vmem [thread:$0]  %s298, 512, %s300, %s287, 512, 128, 8
        $region28: #{tpu_custom_call.1} parent=23 // pred_fallthru
          _
      $region24: #{tpu_custom_call.1} parent=5 // pred_fallthru
        _
      %p306 = scmp.le.s32.totalorder 1, %s26
      %p307 = scmp.lt.s32.totalorder %s26, 5
      %p308 = pnand %p306, %p307
      %p309 = pneg %p308
      // Predicated region
      $region29: #{tpu_custom_call.1} parent=5 // pred_check
        _
      $region30: #{tpu_custom_call.1} parent=5 // pred_check_branch
        %311 = sbr.rel (%p308) target = $region32
      $region31: #{tpu_custom_call.1} parent=5 // pred_region
        %s312 = ssub.s32 %s26, 1
        %s313 = sand.u32 %s53, 1
        %s314 = scalar_lea.sflag [#allocation3], %s313
        %s315 = sand.u32 %s53, 1
        %s316 = smul.addr %s315, 32
        %s317 = scalar_lea.vmem [#allocation2], %s316
        // Predicated region
        $region33: #{tpu_custom_call.1} parent=31 // pred_check
          %p318 = pneg %p66
        $region34: #{tpu_custom_call.1} parent=31 // pred_check_branch
          %320 = sbr.rel (%p318) target = $region36
        $region35: #{tpu_custom_call.1} parent=31 // pred_region
          %321 = dma.done %s314, 512
        $region36: #{tpu_custom_call.1} parent=31 // pred_fallthru
          _
        // Predicated region
        $region37: #{tpu_custom_call.1} parent=31 // pred_check
          %p322 = pneg %p92
        $region38: #{tpu_custom_call.1} parent=31 // pred_check_branch
          %324 = sbr.rel (%p322) target = $region40
        $region39: #{tpu_custom_call.1} parent=31 // pred_region
          %325 = dma.done [#allocation6], 512
        $region40: #{tpu_custom_call.1} parent=31 // pred_fallthru
          _
        // Predicated region
        $region41: #{tpu_custom_call.1} parent=31 // pred_check
          %p326 = pneg %p118
        $region42: #{tpu_custom_call.1} parent=31 // pred_check_branch
          %328 = sbr.rel (%p326) target = $region44
        $region43: #{tpu_custom_call.1} parent=31 // pred_region
          %329 = dma.done [#allocation6], 512
        $region44: #{tpu_custom_call.1} parent=31 // pred_fallthru
          _
        %s330 = sand.u32 %s53, 1
        %s331 = scalar_lea.sflag [#allocation3], %s330
        %s332 = sand.u32 %s53, 1
        %s333 = smul.addr %s332, 32
        %s334 = scalar_lea.vmem [#allocation2], %s333
        %p335 = pneg %p66
        %p336 = pneg %p63
        %p337 = pneg %p92
        %p338 = pneg %p89
        %p339 = pneg %p118
        %p340 = pneg %p115
        %p341 = pneg %p146
        %p342 = pneg %p143
        %s343 = sand.u32 %s133, 1
        %s344 = scalar_lea.sflag [#allocation4], %s343
        %s345 = sand.u32 %s133, 1
        %s346 = smul.addr %s345, 32
        %s347 = scalar_lea.vmem [#allocation8], %s346
        %p348 = pneg %p174
        %p349 = pneg %p171
        %s350 = sand.u32 %s31, 1
        %s351 = scalar_lea.sflag [#allocation10], %s350
        %s352 = sand.u32 %s161, 1
        %s353 = smul.addr %s352, 32
        %s354 = scalar_lea.vmem [#allocation9], %s353
        %p355 = pneg %p202
        %p356 = pneg %p199
        %s357 = sand.u32 %s31, 1
        %s358 = scalar_lea.sflag [#allocation10], %s357
        %s359 = sand.u32 %s189, 1
        %s360 = smul.addr %s359, 32
        %s361 = scalar_lea.vmem [#allocation11], %s360
        %p362 = pneg %p230
        %p363 = pneg %p227
        %s364 = sand.u32 %s217, 1
        %s365 = scalar_lea.sflag [#allocation13], %s364
        %s366 = sand.u32 %s217, 1
        %s367 = smul.addr %s366, 32
        %s368 = scalar_lea.vmem [#allocation12], %s367
        %s369 = smul.u32 2, %s35
        %s370 = smul.u32 2, %s35
        %s371 = smul.u32 2, %s35
        %s372 = smul.u32 2, %s35
        %s373 = smul.u32 2, %s35
        %s374 = smul.u32 2, %s35
        %s375 = smul.u32 2, %s35
        %v376 = vld [vmem:[%s317] sm:$0xff]
        %v377 = vld [vmem:[%s317 + $0x8] sm:$0xff]
        %v378 = vld [vmem:[%s317 + $0x10] sm:$0xff]
        %v379 = vld [vmem:[%s317 + $0x18] sm:$0xff]
        %v380 = vld [vmem:[#allocation5] sm:$0xff]
        %v381 = vld [vmem:[#allocation5 + $0x8] sm:$0xff]
        %v382 = vld [vmem:[#allocation5 + $0x10] sm:$0xff]
        %v383 = vld [vmem:[#allocation5 + $0x18] sm:$0xff]
        %v384 = vld [vmem:[#allocation7] sm:$0xff]
        %v385 = vld [vmem:[#allocation7 + $0x8] sm:$0xff]
        %v386 = vld [vmem:[#allocation7 + $0x10] sm:$0xff]
        %v387 = vld [vmem:[#allocation7 + $0x18] sm:$0xff]
        %vm388 = vcmask 130048
        %v390 = vsel %vm388, %v380, 0
        %v393 = vsel %vm388, %v381, 0
        %395 = vmatprep.subr.mxu0 0.0
        %396 = vmatpush1.msra.mxu0 %v376
        %397 = vmatprep.subr.mxu0 0.0
        %398 = vmatpush1.msra.mxu0 %v377
        %399 = vmatprep.subr.mxu0 0.0
        %400 = vmatpush1.msra.mxu0 0.0
        %401 = vmatprep.subr.mxu0 0.0
        %402 = vmatpush1.msra.mxu0 0.0
        %403 = vmatprep.subr.mxu0 0.0
        %404 = vmatpush1.msra.mxu0 0.0
        %405 = vmatprep.subr.mxu0 0.0
        %406 = vmatpush1.msra.mxu0 0.0
        %407 = vmatprep.subr.mxu0 0.0
        %408 = vmatpush1.msra.mxu0 0.0
        %409 = vmatprep.subr.mxu0 0.0
        %410 = vmatpush1.msra.mxu0 0.0
        %411 = vmatprep.subr.mxu0 0.0
        %412 = vmatpush1.msra.mxu0 0.0
        %413 = vmatprep.subr.mxu0 0.0
        %414 = vmatpush1.msra.mxu0 0.0
        %415 = vmatprep.subr.mxu0 0.0
        %416 = vmatpush1.msra.mxu0 0.0
        %417 = vmatprep.subr.mxu0 0.0
        %418 = vmatpush1.msra.mxu0 0.0
        %419 = vmatprep.subr.mxu0 0.0
        %420 = vmatpush1.msra.mxu0 0.0
        %421 = vmatprep.subr.mxu0 0.0
        %422 = vmatpush1.msra.mxu0 0.0
        %423 = vmatprep.subr.mxu0 0.0
        %424 = vmatpush1.msra.mxu0 0.0
        %425 = vmatprep.subr.mxu0 0.0
        %426 = vmatpush1.msra.mxu0 0.0
        %427 = vmatprep.subr.mxu0 0.0
        %428 = vmatpush1.msra.mxu0 0.0
        %429 = vmatprep.subr.mxu0 0.0
        %430 = vmatpush1.msra.mxu0 0.0
        %431 = vmatprep.subr.mxu0 0.0
        %432 = vmatpush1.msra.mxu0 0.0
        %433 = vmatprep.subr.mxu0 0.0
        %434 = vmatpush1.msra.mxu0 0.0
        %435 = vmatprep.subr.mxu0 0.0
        %436 = vmatpush1.msra.mxu0 0.0
        %437 = vmatprep.subr.mxu0 0.0
        %438 = vmatpush1.msra.mxu0 0.0
        %439 = vmatprep.subr.mxu0 0.0
        %440 = vmatpush1.msra.mxu0 0.0
        %441 = vmatprep.subr.mxu0 0.0
        %442 = vmatpush1.msra.mxu0 0.0
        %443 = vmatprep.subr.mxu0 0.0
        %444 = vmatpush1.msra.mxu0 0.0
        %445 = vmatprep.subr.mxu0 0.0
        %446 = vmatpush1.msra.mxu0 0.0
        %447 = vmatprep.subr.mxu0 0.0
        %448 = vmatpush1.msra.mxu0 0.0
        %449 = vmatprep.subr.mxu0 0.0
        %450 = vmatpush1.msra.mxu0 0.0
        %451 = vmatprep.subr.mxu0 0.0
        %452 = vmatpush1.msra.mxu0 0.0
        %453 = vmatprep.subr.mxu0 0.0
        %454 = vmatpush1.msra.mxu0 0.0
        %455 = vmatprep.subr.mxu0 0.0
        %456 = vmatpush1.msra.mxu0 0.0
        %457 = vmatprep.subr.mxu0 0.0
        %458 = vmatpush1.msra.mxu0 0.0
        %459 = vmatprep.mubr.f32.mxu0 0.0
        %460 = vmatmul.mubr.f32.gmra.mrb[0].mxu0 %v390
        %v461 = vpop.f32.mrb[0].mxu0
        %v462 = vadd.f32 0.0, %v461
        %v463 = vpop.f32.mrb[0].mxu0
        %464 = vmatprep.mubr.f32.mxu0 0.0
        %465 = vmatmul.mubr.f32.gmra.mrb[0].mxu0 %v393
        %v466 = vpop.f32.mrb[0].mxu0
        %v467 = vadd.f32 0.0, %v466
        %v468 = vpop.f32.mrb[0].mxu0
        %469 = vdwg.mxu0
        %v471 = vsel %vm388, %v382, 0
        %v474 = vsel %vm388, %v383, 0
        %476 = vmatprep.subr.mxu0 0.0
        %477 = vmatpush1.msra.mxu0 %v378
        %478 = vmatprep.subr.mxu0 0.0
        %479 = vmatpush1.msra.mxu0 %v379
        %480 = vmatprep.subr.mxu0 0.0
        %481 = vmatpush1.msra.mxu0 0.0
        %482 = vmatprep.subr.mxu0 0.0
        %483 = vmatpush1.msra.mxu0 0.0
        %484 = vmatprep.subr.mxu0 0.0
        %485 = vmatpush1.msra.mxu0 0.0
        %486 = vmatprep.subr.mxu0 0.0
        %487 = vmatpush1.msra.mxu0 0.0
        %488 = vmatprep.subr.mxu0 0.0
        %489 = vmatpush1.msra.mxu0 0.0
        %490 = vmatprep.subr.mxu0 0.0
        %491 = vmatpush1.msra.mxu0 0.0
        %492 = vmatprep.subr.mxu0 0.0
        %493 = vmatpush1.msra.mxu0 0.0
        %494 = vmatprep.subr.mxu0 0.0
        %495 = vmatpush1.msra.mxu0 0.0
        %496 = vmatprep.subr.mxu0 0.0
        %497 = vmatpush1.msra.mxu0 0.0
        %498 = vmatprep.subr.mxu0 0.0
        %499 = vmatpush1.msra.mxu0 0.0
        %500 = vmatprep.subr.mxu0 0.0
        %501 = vmatpush1.msra.mxu0 0.0
        %502 = vmatprep.subr.mxu0 0.0
        %503 = vmatpush1.msra.mxu0 0.0
        %504 = vmatprep.subr.mxu0 0.0
        %505 = vmatpush1.msra.mxu0 0.0
        %506 = vmatprep.subr.mxu0 0.0
        %507 = vmatpush1.msra.mxu0 0.0
        %508 = vmatprep.subr.mxu0 0.0
        %509 = vmatpush1.msra.mxu0 0.0
        %510 = vmatprep.subr.mxu0 0.0
        %511 = vmatpush1.msra.mxu0 0.0
        %512 = vmatprep.subr.mxu0 0.0
        %513 = vmatpush1.msra.mxu0 0.0
        %514 = vmatprep.subr.mxu0 0.0
        %515 = vmatpush1.msra.mxu0 0.0
        %516 = vmatprep.subr.mxu0 0.0
        %517 = vmatpush1.msra.mxu0 0.0
        %518 = vmatprep.subr.mxu0 0.0
        %519 = vmatpush1.msra.mxu0 0.0
        %520 = vmatprep.subr.mxu0 0.0
        %521 = vmatpush1.msra.mxu0 0.0
        %522 = vmatprep.subr.mxu0 0.0
        %523 = vmatpush1.msra.mxu0 0.0
        %524 = vmatprep.subr.mxu0 0.0
        %525 = vmatpush1.msra.mxu0 0.0
        %526 = vmatprep.subr.mxu0 0.0
        %527 = vmatpush1.msra.mxu0 0.0
        %528 = vmatprep.subr.mxu0 0.0
        %529 = vmatpush1.msra.mxu0 0.0
        %530 = vmatprep.subr.mxu0 0.0
        %531 = vmatpush1.msra.mxu0 0.0
        %532 = vmatprep.subr.mxu0 0.0
        %533 = vmatpush1.msra.mxu0 0.0
        %534 = vmatprep.subr.mxu0 0.0
        %535 = vmatpush1.msra.mxu0 0.0
        %536 = vmatprep.subr.mxu0 0.0
        %537 = vmatpush1.msra.mxu0 0.0
        %538 = vmatprep.subr.mxu0 0.0
        %539 = vmatpush1.msra.mxu0 0.0
        %540 = vmatprep.mubr.f32.mxu0 0.0
        %541 = vmatmul.mubr.f32.gmra.mrb[0].mxu0 %v471
        %v542 = vpop.f32.mrb[0].mxu0
        %v543 = vadd.f32 0.0, %v542
        %v544 = vpop.f32.mrb[0].mxu0
        %545 = vmatprep.mubr.f32.mxu0 0.0
        %546 = vmatmul.mubr.f32.gmra.mrb[0].mxu0 %v474
        %v547 = vpop.f32.mrb[0].mxu0
        %v548 = vadd.f32 0.0, %v547
        %v549 = vpop.f32.mrb[0].mxu0
        %550 = vdwg.mxu0
        %551 = vst [vmem:[%s347] sm:$0xff] %v462
        %552 = vst [vmem:[%s347 + $0x8] sm:$0xff] %v467
        %553 = vst [vmem:[%s347 + $0x10] sm:$0xff] %v543
        %554 = vst [vmem:[%s347 + $0x18] sm:$0xff] %v548
        %555 = vmatprep.subr.mxu0 0.0
        %556 = vmatpush1.msra.mxu0 %v462
        %557 = vmatprep.subr.mxu0 0.0
        %558 = vmatpush1.msra.mxu0 %v467
        %559 = vmatprep.subr.mxu0 0.0
        %560 = vmatpush1.msra.mxu0 0.0
        %561 = vmatprep.subr.mxu0 0.0
        %562 = vmatpush1.msra.mxu0 0.0
        %563 = vmatprep.subr.mxu0 0.0
        %564 = vmatpush1.msra.mxu0 0.0
        %565 = vmatprep.subr.mxu0 0.0
        %566 = vmatpush1.msra.mxu0 0.0
        %567 = vmatprep.subr.mxu0 0.0
        %568 = vmatpush1.msra.mxu0 0.0
        %569 = vmatprep.subr.mxu0 0.0
        %570 = vmatpush1.msra.mxu0 0.0
        %571 = vmatprep.subr.mxu0 0.0
        %572 = vmatpush1.msra.mxu0 0.0
        %573 = vmatprep.subr.mxu0 0.0
        %574 = vmatpush1.msra.mxu0 0.0
        %575 = vmatprep.subr.mxu0 0.0
        %576 = vmatpush1.msra.mxu0 0.0
        %577 = vmatprep.subr.mxu0 0.0
        %578 = vmatpush1.msra.mxu0 0.0
        %579 = vmatprep.subr.mxu0 0.0
        %580 = vmatpush1.msra.mxu0 0.0
        %581 = vmatprep.subr.mxu0 0.0
        %582 = vmatpush1.msra.mxu0 0.0
        %583 = vmatprep.subr.mxu0 0.0
        %584 = vmatpush1.msra.mxu0 0.0
        %585 = vmatprep.subr.mxu0 0.0
        %586 = vmatpush1.msra.mxu0 0.0
        %587 = vmatprep.subr.mxu0 0.0
        %588 = vmatpush1.msra.mxu0 0.0
        %589 = vmatprep.subr.mxu0 0.0
        %590 = vmatpush1.msra.mxu0 0.0
        %591 = vmatprep.subr.mxu0 0.0
        %592 = vmatpush1.msra.mxu0 0.0
        %593 = vmatprep.subr.mxu0 0.0
        %594 = vmatpush1.msra.mxu0 0.0
        %595 = vmatprep.subr.mxu0 0.0
        %596 = vmatpush1.msra.mxu0 0.0
        %597 = vmatprep.subr.mxu0 0.0
        %598 = vmatpush1.msra.mxu0 0.0
        %599 = vmatprep.subr.mxu0 0.0
        %600 = vmatpush1.msra.mxu0 0.0
        %601 = vmatprep.subr.mxu0 0.0
        %602 = vmatpush1.msra.mxu0 0.0
        %603 = vmatprep.subr.mxu0 0.0
        %604 = vmatpush1.msra.mxu0 0.0
        %605 = vmatprep.subr.mxu0 0.0
        %606 = vmatpush1.msra.mxu0 0.0
        %607 = vmatprep.subr.mxu0 0.0
        %608 = vmatpush1.msra.mxu0 0.0
        %609 = vmatprep.subr.mxu0 0.0
        %610 = vmatpush1.msra.mxu0 0.0
        %611 = vmatprep.subr.mxu0 0.0
        %612 = vmatpush1.msra.mxu0 0.0
        %613 = vmatprep.subr.mxu0 0.0
        %614 = vmatpush1.msra.mxu0 0.0
        %615 = vmatprep.subr.mxu0 0.0
        %616 = vmatpush1.msra.mxu0 0.0
        %617 = vmatprep.subr.mxu0 0.0
        %618 = vmatpush1.msra.mxu0 0.0
        %619 = vmatprep.mubr.f32.mxu0 0.0
        %620 = vmatmul.mubr.f32.gmra.mrb[0].mxu0 %v390
        %v621 = vpop.f32.mrb[0].mxu0
        %v622 = vadd.f32 0.0, %v621
        %v623 = vpop.f32.mrb[0].mxu0
        %624 = vmatprep.mubr.f32.mxu0 0.0
        %625 = vmatmul.mubr.f32.gmra.mrb[0].mxu0 %v393
        %v626 = vpop.f32.mrb[0].mxu0
        %v627 = vadd.f32 0.0, %v626
        %v628 = vpop.f32.mrb[0].mxu0
        %629 = vdwg.mxu0
        %630 = vmatprep.subr.mxu0 0.0
        %631 = vmatpush1.msra.mxu0 %v543
        %632 = vmatprep.subr.mxu0 0.0
        %633 = vmatpush1.msra.mxu0 %v548
        %634 = vmatprep.subr.mxu0 0.0
        %635 = vmatpush1.msra.mxu0 0.0
        %636 = vmatprep.subr.mxu0 0.0
        %637 = vmatpush1.msra.mxu0 0.0
        %638 = vmatprep.subr.mxu0 0.0
        %639 = vmatpush1.msra.mxu0 0.0
        %640 = vmatprep.subr.mxu0 0.0
        %641 = vmatpush1.msra.mxu0 0.0
        %642 = vmatprep.subr.mxu0 0.0
        %643 = vmatpush1.msra.mxu0 0.0
        %644 = vmatprep.subr.mxu0 0.0
        %645 = vmatpush1.msra.mxu0 0.0
        %646 = vmatprep.subr.mxu0 0.0
        %647 = vmatpush1.msra.mxu0 0.0
        %648 = vmatprep.subr.mxu0 0.0
        %649 = vmatpush1.msra.mxu0 0.0
        %650 = vmatprep.subr.mxu0 0.0
        %651 = vmatpush1.msra.mxu0 0.0
        %652 = vmatprep.subr.mxu0 0.0
        %653 = vmatpush1.msra.mxu0 0.0
        %654 = vmatprep.subr.mxu0 0.0
        %655 = vmatpush1.msra.mxu0 0.0
        %656 = vmatprep.subr.mxu0 0.0
        %657 = vmatpush1.msra.mxu0 0.0
        %658 = vmatprep.subr.mxu0 0.0
        %659 = vmatpush1.msra.mxu0 0.0
        %660 = vmatprep.subr.mxu0 0.0
        %661 = vmatpush1.msra.mxu0 0.0
        %662 = vmatprep.subr.mxu0 0.0
        %663 = vmatpush1.msra.mxu0 0.0
        %664 = vmatprep.subr.mxu0 0.0
        %665 = vmatpush1.msra.mxu0 0.0
        %666 = vmatprep.subr.mxu0 0.0
        %667 = vmatpush1.msra.mxu0 0.0
        %668 = vmatprep.subr.mxu0 0.0
        %669 = vmatpush1.msra.mxu0 0.0
        %670 = vmatprep.subr.mxu0 0.0
        %671 = vmatpush1.msra.mxu0 0.0
        %672 = vmatprep.subr.mxu0 0.0
        %673 = vmatpush1.msra.mxu0 0.0
        %674 = vmatprep.subr.mxu0 0.0
        %675 = vmatpush1.msra.mxu0 0.0
        %676 = vmatprep.subr.mxu0 0.0
        %677 = vmatpush1.msra.mxu0 0.0
        %678 = vmatprep.subr.mxu0 0.0
        %679 = vmatpush1.msra.mxu0 0.0
        %680 = vmatprep.subr.mxu0 0.0
        %681 = vmatpush1.msra.mxu0 0.0
        %682 = vmatprep.subr.mxu0 0.0
        %683 = vmatpush1.msra.mxu0 0.0
        %684 = vmatprep.subr.mxu0 0.0
        %685 = vmatpush1.msra.mxu0 0.0
        %686 = vmatprep.subr.mxu0 0.0
        %687 = vmatpush1.msra.mxu0 0.0
        %688 = vmatprep.subr.mxu0 0.0
        %689 = vmatpush1.msra.mxu0 0.0
        %690 = vmatprep.subr.mxu0 0.0
        %691 = vmatpush1.msra.mxu0 0.0
        %692 = vmatprep.subr.mxu0 0.0
        %693 = vmatpush1.msra.mxu0 0.0
        %694 = vmatprep.mubr.f32.mxu0 0.0
        %695 = vmatmul.mubr.f32.gmra.mrb[0].mxu0 %v471
        %v696 = vpop.f32.mrb[0].mxu0
        %v697 = vadd.f32 0.0, %v696
        %v698 = vpop.f32.mrb[0].mxu0
        %699 = vmatprep.mubr.f32.mxu0 0.0
        %700 = vmatmul.mubr.f32.gmra.mrb[0].mxu0 %v474
        %v701 = vpop.f32.mrb[0].mxu0
        %v702 = vadd.f32 0.0, %v701
        %v703 = vpop.f32.mrb[0].mxu0
        %704 = vdwg.mxu0
        %705 = vst [vmem:[%s354] sm:$0xff] %v622
        %706 = vst [vmem:[%s354 + $0x8] sm:$0xff] %v627
        %707 = vst [vmem:[%s354 + $0x10] sm:$0xff] %v697
        %708 = vst [vmem:[%s354 + $0x18] sm:$0xff] %v702
        %v710 = vsel %vm388, %v384, 0
        %v713 = vsel %vm388, %v385, 0
        %715 = vmatprep.subr.mxu0 0.0
        %716 = vmatpush1.msra.mxu0 %v376
        %717 = vmatprep.subr.mxu0 0.0
        %718 = vmatpush1.msra.mxu0 %v377
        %719 = vmatprep.subr.mxu0 0.0
        %720 = vmatpush1.msra.mxu0 0.0
        %721 = vmatprep.subr.mxu0 0.0
        %722 = vmatpush1.msra.mxu0 0.0
        %723 = vmatprep.subr.mxu0 0.0
        %724 = vmatpush1.msra.mxu0 0.0
        %725 = vmatprep.subr.mxu0 0.0
        %726 = vmatpush1.msra.mxu0 0.0
        %727 = vmatprep.subr.mxu0 0.0
        %728 = vmatpush1.msra.mxu0 0.0
        %729 = vmatprep.subr.mxu0 0.0
        %730 = vmatpush1.msra.mxu0 0.0
        %731 = vmatprep.subr.mxu0 0.0
        %732 = vmatpush1.msra.mxu0 0.0
        %733 = vmatprep.subr.mxu0 0.0
        %734 = vmatpush1.msra.mxu0 0.0
        %735 = vmatprep.subr.mxu0 0.0
        %736 = vmatpush1.msra.mxu0 0.0
        %737 = vmatprep.subr.mxu0 0.0
        %738 = vmatpush1.msra.mxu0 0.0
        %739 = vmatprep.subr.mxu0 0.0
        %740 = vmatpush1.msra.mxu0 0.0
        %741 = vmatprep.subr.mxu0 0.0
        %742 = vmatpush1.msra.mxu0 0.0
        %743 = vmatprep.subr.mxu0 0.0
        %744 = vmatpush1.msra.mxu0 0.0
        %745 = vmatprep.subr.mxu0 0.0
        %746 = vmatpush1.msra.mxu0 0.0
        %747 = vmatprep.subr.mxu0 0.0
        %748 = vmatpush1.msra.mxu0 0.0
        %749 = vmatprep.subr.mxu0 0.0
        %750 = vmatpush1.msra.mxu0 0.0
        %751 = vmatprep.subr.mxu0 0.0
        %752 = vmatpush1.msra.mxu0 0.0
        %753 = vmatprep.subr.mxu0 0.0
        %754 = vmatpush1.msra.mxu0 0.0
        %755 = vmatprep.subr.mxu0 0.0
        %756 = vmatpush1.msra.mxu0 0.0
        %757 = vmatprep.subr.mxu0 0.0
        %758 = vmatpush1.msra.mxu0 0.0
        %759 = vmatprep.subr.mxu0 0.0
        %760 = vmatpush1.msra.mxu0 0.0
        %761 = vmatprep.subr.mxu0 0.0
        %762 = vmatpush1.msra.mxu0 0.0
        %763 = vmatprep.subr.mxu0 0.0
        %764 = vmatpush1.msra.mxu0 0.0
        %765 = vmatprep.subr.mxu0 0.0
        %766 = vmatpush1.msra.mxu0 0.0
        %767 = vmatprep.subr.mxu0 0.0
        %768 = vmatpush1.msra.mxu0 0.0
        %769 = vmatprep.subr.mxu0 0.0
        %770 = vmatpush1.msra.mxu0 0.0
        %771 = vmatprep.subr.mxu0 0.0
        %772 = vmatpush1.msra.mxu0 0.0
        %773 = vmatprep.subr.mxu0 0.0
        %774 = vmatpush1.msra.mxu0 0.0
        %775 = vmatprep.subr.mxu0 0.0
        %776 = vmatpush1.msra.mxu0 0.0
        %777 = vmatprep.subr.mxu0 0.0
        %778 = vmatpush1.msra.mxu0 0.0
        %779 = vmatprep.mubr.f32.mxu0 0.0
        %780 = vmatmul.mubr.f32.gmra.mrb[0].mxu0 %v710
        %v781 = vpop.f32.mrb[0].mxu0
        %v782 = vadd.f32 0.0, %v781
        %v783 = vpop.f32.mrb[0].mxu0
        %784 = vmatprep.mubr.f32.mxu0 0.0
        %785 = vmatmul.mubr.f32.gmra.mrb[0].mxu0 %v713
        %v786 = vpop.f32.mrb[0].mxu0
        %v787 = vadd.f32 0.0, %v786
        %v788 = vpop.f32.mrb[0].mxu0
        %789 = vdwg.mxu0
        %v791 = vsel %vm388, %v386, 0
        %v794 = vsel %vm388, %v387, 0
        %796 = vmatprep.subr.mxu0 0.0
        %797 = vmatpush1.msra.mxu0 %v378
        %798 = vmatprep.subr.mxu0 0.0
        %799 = vmatpush1.msra.mxu0 %v379
        %800 = vmatprep.subr.mxu0 0.0
        %801 = vmatpush1.msra.mxu0 0.0
        %802 = vmatprep.subr.mxu0 0.0
        %803 = vmatpush1.msra.mxu0 0.0
        %804 = vmatprep.subr.mxu0 0.0
        %805 = vmatpush1.msra.mxu0 0.0
        %806 = vmatprep.subr.mxu0 0.0
        %807 = vmatpush1.msra.mxu0 0.0
        %808 = vmatprep.subr.mxu0 0.0
        %809 = vmatpush1.msra.mxu0 0.0
        %810 = vmatprep.subr.mxu0 0.0
        %811 = vmatpush1.msra.mxu0 0.0
        %812 = vmatprep.subr.mxu0 0.0
        %813 = vmatpush1.msra.mxu0 0.0
        %814 = vmatprep.subr.mxu0 0.0
        %815 = vmatpush1.msra.mxu0 0.0
        %816 = vmatprep.subr.mxu0 0.0
        %817 = vmatpush1.msra.mxu0 0.0
        %818 = vmatprep.subr.mxu0 0.0
        %819 = vmatpush1.msra.mxu0 0.0
        %820 = vmatprep.subr.mxu0 0.0
        %821 = vmatpush1.msra.mxu0 0.0
        %822 = vmatprep.subr.mxu0 0.0
        %823 = vmatpush1.msra.mxu0 0.0
        %824 = vmatprep.subr.mxu0 0.0
        %825 = vmatpush1.msra.mxu0 0.0
        %826 = vmatprep.subr.mxu0 0.0
        %827 = vmatpush1.msra.mxu0 0.0
        %828 = vmatprep.subr.mxu0 0.0
        %829 = vmatpush1.msra.mxu0 0.0
        %830 = vmatprep.subr.mxu0 0.0
        %831 = vmatpush1.msra.mxu0 0.0
        %832 = vmatprep.subr.mxu0 0.0
        %833 = vmatpush1.msra.mxu0 0.0
        %834 = vmatprep.subr.mxu0 0.0
        %835 = vmatpush1.msra.mxu0 0.0
        %836 = vmatprep.subr.mxu0 0.0
        %837 = vmatpush1.msra.mxu0 0.0
        %838 = vmatprep.subr.mxu0 0.0
        %839 = vmatpush1.msra.mxu0 0.0
        %840 = vmatprep.subr.mxu0 0.0
        %841 = vmatpush1.msra.mxu0 0.0
        %842 = vmatprep.subr.mxu0 0.0
        %843 = vmatpush1.msra.mxu0 0.0
        %844 = vmatprep.subr.mxu0 0.0
        %845 = vmatpush1.msra.mxu0 0.0
        %846 = vmatprep.subr.mxu0 0.0
        %847 = vmatpush1.msra.mxu0 0.0
        %848 = vmatprep.subr.mxu0 0.0
        %849 = vmatpush1.msra.mxu0 0.0
        %850 = vmatprep.subr.mxu0 0.0
        %851 = vmatpush1.msra.mxu0 0.0
        %852 = vmatprep.subr.mxu0 0.0
        %853 = vmatpush1.msra.mxu0 0.0
        %854 = vmatprep.subr.mxu0 0.0
        %855 = vmatpush1.msra.mxu0 0.0
        %856 = vmatprep.subr.mxu0 0.0
        %857 = vmatpush1.msra.mxu0 0.0
        %858 = vmatprep.subr.mxu0 0.0
        %859 = vmatpush1.msra.mxu0 0.0
        %860 = vmatprep.mubr.f32.mxu0 0.0
        %861 = vmatmul.mubr.f32.gmra.mrb[0].mxu0 %v791
        %v862 = vpop.f32.mrb[0].mxu0
        %v863 = vadd.f32 0.0, %v862
        %v864 = vpop.f32.mrb[0].mxu0
        %865 = vmatprep.mubr.f32.mxu0 0.0
        %866 = vmatmul.mubr.f32.gmra.mrb[0].mxu0 %v794
        %v867 = vpop.f32.mrb[0].mxu0
        %v868 = vadd.f32 0.0, %v867
        %v869 = vpop.f32.mrb[0].mxu0
        %870 = vdwg.mxu0
        %871 = vst [vmem:[%s361] sm:$0xff] %v782
        %872 = vst [vmem:[%s361 + $0x8] sm:$0xff] %v787
        %873 = vst [vmem:[%s361 + $0x10] sm:$0xff] %v863
        %874 = vst [vmem:[%s361 + $0x18] sm:$0xff] %v868
        %875 = vmatprep.subr.mxu0 0.0
        %876 = vmatpush1.msra.mxu0 %v782
        %877 = vmatprep.subr.mxu0 0.0
        %878 = vmatpush1.msra.mxu0 %v787
        %879 = vmatprep.subr.mxu0 0.0
        %880 = vmatpush1.msra.mxu0 0.0
        %881 = vmatprep.subr.mxu0 0.0
        %882 = vmatpush1.msra.mxu0 0.0
        %883 = vmatprep.subr.mxu0 0.0
        %884 = vmatpush1.msra.mxu0 0.0
        %885 = vmatprep.subr.mxu0 0.0
        %886 = vmatpush1.msra.mxu0 0.0
        %887 = vmatprep.subr.mxu0 0.0
        %888 = vmatpush1.msra.mxu0 0.0
        %889 = vmatprep.subr.mxu0 0.0
        %890 = vmatpush1.msra.mxu0 0.0
        %891 = vmatprep.subr.mxu0 0.0
        %892 = vmatpush1.msra.mxu0 0.0
        %893 = vmatprep.subr.mxu0 0.0
        %894 = vmatpush1.msra.mxu0 0.0
        %895 = vmatprep.subr.mxu0 0.0
        %896 = vmatpush1.msra.mxu0 0.0
        %897 = vmatprep.subr.mxu0 0.0
        %898 = vmatpush1.msra.mxu0 0.0
        %899 = vmatprep.subr.mxu0 0.0
        %900 = vmatpush1.msra.mxu0 0.0
        %901 = vmatprep.subr.mxu0 0.0
        %902 = vmatpush1.msra.mxu0 0.0
        %903 = vmatprep.subr.mxu0 0.0
        %904 = vmatpush1.msra.mxu0 0.0
        %905 = vmatprep.subr.mxu0 0.0
        %906 = vmatpush1.msra.mxu0 0.0
        %907 = vmatprep.subr.mxu0 0.0
        %908 = vmatpush1.msra.mxu0 0.0
        %909 = vmatprep.subr.mxu0 0.0
        %910 = vmatpush1.msra.mxu0 0.0
        %911 = vmatprep.subr.mxu0 0.0
        %912 = vmatpush1.msra.mxu0 0.0
        %913 = vmatprep.subr.mxu0 0.0
        %914 = vmatpush1.msra.mxu0 0.0
        %915 = vmatprep.subr.mxu0 0.0
        %916 = vmatpush1.msra.mxu0 0.0
        %917 = vmatprep.subr.mxu0 0.0
        %918 = vmatpush1.msra.mxu0 0.0
        %919 = vmatprep.subr.mxu0 0.0
        %920 = vmatpush1.msra.mxu0 0.0
        %921 = vmatprep.subr.mxu0 0.0
        %922 = vmatpush1.msra.mxu0 0.0
        %923 = vmatprep.subr.mxu0 0.0
        %924 = vmatpush1.msra.mxu0 0.0
        %925 = vmatprep.subr.mxu0 0.0
        %926 = vmatpush1.msra.mxu0 0.0
        %927 = vmatprep.subr.mxu0 0.0
        %928 = vmatpush1.msra.mxu0 0.0
        %929 = vmatprep.subr.mxu0 0.0
        %930 = vmatpush1.msra.mxu0 0.0
        %931 = vmatprep.subr.mxu0 0.0
        %932 = vmatpush1.msra.mxu0 0.0
        %933 = vmatprep.subr.mxu0 0.0
        %934 = vmatpush1.msra.mxu0 0.0
        %935 = vmatprep.subr.mxu0 0.0
        %936 = vmatpush1.msra.mxu0 0.0
        %937 = vmatprep.subr.mxu0 0.0
        %938 = vmatpush1.msra.mxu0 0.0
        %939 = vmatprep.mubr.f32.mxu0 0.0
        %940 = vmatmul.mubr.f32.gmra.mrb[0].mxu0 %v710
        %v941 = vpop.f32.mrb[0].mxu0
        %v942 = vadd.f32 0.0, %v941
        %v943 = vpop.f32.mrb[0].mxu0
        %944 = vmatprep.mubr.f32.mxu0 0.0
        %945 = vmatmul.mubr.f32.gmra.mrb[0].mxu0 %v713
        %v946 = vpop.f32.mrb[0].mxu0
        %v947 = vadd.f32 0.0, %v946
        %v948 = vpop.f32.mrb[0].mxu0
        %949 = vdwg.mxu0
        %950 = vmatprep.subr.mxu0 0.0
        %951 = vmatpush1.msra.mxu0 %v863
        %952 = vmatprep.subr.mxu0 0.0
        %953 = vmatpush1.msra.mxu0 %v868
        %954 = vmatprep.subr.mxu0 0.0
        %955 = vmatpush1.msra.mxu0 0.0
        %956 = vmatprep.subr.mxu0 0.0
        %957 = vmatpush1.msra.mxu0 0.0
        %958 = vmatprep.subr.mxu0 0.0
        %959 = vmatpush1.msra.mxu0 0.0
        %960 = vmatprep.subr.mxu0 0.0
        %961 = vmatpush1.msra.mxu0 0.0
        %962 = vmatprep.subr.mxu0 0.0
        %963 = vmatpush1.msra.mxu0 0.0
        %964 = vmatprep.subr.mxu0 0.0
        %965 = vmatpush1.msra.mxu0 0.0
        %966 = vmatprep.subr.mxu0 0.0
        %967 = vmatpush1.msra.mxu0 0.0
        %968 = vmatprep.subr.mxu0 0.0
        %969 = vmatpush1.msra.mxu0 0.0
        %970 = vmatprep.subr.mxu0 0.0
        %971 = vmatpush1.msra.mxu0 0.0
        %972 = vmatprep.subr.mxu0 0.0
        %973 = vmatpush1.msra.mxu0 0.0
        %974 = vmatprep.subr.mxu0 0.0
        %975 = vmatpush1.msra.mxu0 0.0
        %976 = vmatprep.subr.mxu0 0.0
        %977 = vmatpush1.msra.mxu0 0.0
        %978 = vmatprep.subr.mxu0 0.0
        %979 = vmatpush1.msra.mxu0 0.0
        %980 = vmatprep.subr.mxu0 0.0
        %981 = vmatpush1.msra.mxu0 0.0
        %982 = vmatprep.subr.mxu0 0.0
        %983 = vmatpush1.msra.mxu0 0.0
        %984 = vmatprep.subr.mxu0 0.0
        %985 = vmatpush1.msra.mxu0 0.0
        %986 = vmatprep.subr.mxu0 0.0
        %987 = vmatpush1.msra.mxu0 0.0
        %988 = vmatprep.subr.mxu0 0.0
        %989 = vmatpush1.msra.mxu0 0.0
        %990 = vmatprep.subr.mxu0 0.0
        %991 = vmatpush1.msra.mxu0 0.0
        %992 = vmatprep.subr.mxu0 0.0
        %993 = vmatpush1.msra.mxu0 0.0
        %994 = vmatprep.subr.mxu0 0.0
        %995 = vmatpush1.msra.mxu0 0.0
        %996 = vmatprep.subr.mxu0 0.0
        %997 = vmatpush1.msra.mxu0 0.0
        %998 = vmatprep.subr.mxu0 0.0
        %999 = vmatpush1.msra.mxu0 0.0
        %1000 = vmatprep.subr.mxu0 0.0
        %1001 = vmatpush1.msra.mxu0 0.0
        %1002 = vmatprep.subr.mxu0 0.0
        %1003 = vmatpush1.msra.mxu0 0.0
        %1004 = vmatprep.subr.mxu0 0.0
        %1005 = vmatpush1.msra.mxu0 0.0
        %1006 = vmatprep.subr.mxu0 0.0
        %1007 = vmatpush1.msra.mxu0 0.0
        %1008 = vmatprep.subr.mxu0 0.0
        %1009 = vmatpush1.msra.mxu0 0.0
        %1010 = vmatprep.subr.mxu0 0.0
        %1011 = vmatpush1.msra.mxu0 0.0
        %1012 = vmatprep.subr.mxu0 0.0
        %1013 = vmatpush1.msra.mxu0 0.0
        %1014 = vmatprep.mubr.f32.mxu0 0.0
        %1015 = vmatmul.mubr.f32.gmra.mrb[0].mxu0 %v791
        %v1016 = vpop.f32.mrb[0].mxu0
        %v1017 = vadd.f32 0.0, %v1016
        %v1018 = vpop.f32.mrb[0].mxu0
        %1019 = vmatprep.mubr.f32.mxu0 0.0
        %1020 = vmatmul.mubr.f32.gmra.mrb[0].mxu0 %v794
        %v1021 = vpop.f32.mrb[0].mxu0
        %v1022 = vadd.f32 0.0, %v1021
        %v1023 = vpop.f32.mrb[0].mxu0
        %1024 = vdwg.mxu0
        %1025 = vst [vmem:[%s368] sm:$0xff] %v942
        %1026 = vst [vmem:[%s368 + $0x8] sm:$0xff] %v947
        %1027 = vst [vmem:[%s368 + $0x10] sm:$0xff] %v1017
        %1028 = vst [vmem:[%s368 + $0x18] sm:$0xff] %v1022
        %s1029 = sand.u32 %s133, 1
        %s1030 = scalar_lea.sflag [#allocation4], %s1029
        %s1031 = sand.u32 %s133, 1
        %s1032 = smul.addr %s1031, 32
        %s1033 = scalar_lea.vmem [#allocation8], %s1032
        %s1034 = sand.u32 %s31, 1
        %s1035 = scalar_lea.sflag [#allocation10], %s1034
        %s1036 = sand.u32 %s161, 1
        %s1037 = smul.addr %s1036, 32
        %s1038 = scalar_lea.vmem [#allocation9], %s1037
        %s1039 = sand.u32 %s31, 1
        %s1040 = scalar_lea.sflag [#allocation10], %s1039
        %s1041 = sand.u32 %s189, 1
        %s1042 = smul.addr %s1041, 32
        %s1043 = scalar_lea.vmem [#allocation11], %s1042
        %s1044 = sand.u32 %s217, 1
        %s1045 = scalar_lea.sflag [#allocation13], %s1044
        %s1046 = sand.u32 %s217, 1
        %s1047 = smul.addr %s1046, 32
        %s1048 = scalar_lea.vmem [#allocation12], %s1047
        // Predicated region
        $region45: #{tpu_custom_call.1} parent=31 // pred_check
          %p1049 = pneg %p143
        $region46: #{tpu_custom_call.1} parent=31 // pred_check_branch
          %1051 = sbr.rel (%p1049) target = $region48
        $region47: #{tpu_custom_call.1} parent=31 // pred_region
          %s1052 = smul.u32 2, %s35
          %s1054 = ssub.s32 512, 512
          %1055 = vsyncadd %s1030, %s1054
          %s1056 = smul.addr %s1052, 8
          %s1057 = sadd.s32 %s36, %s1056
          %s1058 = smul.addr %s1057, 128
          %s1059 = scalar_lea.hbm %s3, %s1058
          %s1060 = sshll.u32 %s1033, 4
          %s1061 = int_to_ptr.vmem [resolvable:$true] %s1060
          %1066 = dma.vmem_to_hbm [thread:$0]  %s1061, 512, %s1059, %s1030, 128, 512, 8
        $region48: #{tpu_custom_call.1} parent=31 // pred_fallthru
          _
        // Predicated region
        $region49: #{tpu_custom_call.1} parent=31 // pred_check
          %p1067 = pneg %p171
        $region50: #{tpu_custom_call.1} parent=31 // pred_check_branch
          %1069 = sbr.rel (%p1067) target = $region52
        $region51: #{tpu_custom_call.1} parent=31 // pred_region
          %s1070 = smul.u32 2, %s35
          %s1072 = ssub.s32 512, 512
          %1073 = vsyncadd %s1035, %s1072
          %s1074 = smul.addr %s1070, 8
          %s1075 = sadd.s32 %s36, %s1074
          %s1076 = smul.addr %s1075, 128
          %s1077 = scalar_lea.hbm %s4, %s1076
          %s1078 = sshll.u32 %s1038, 4
          %s1079 = int_to_ptr.vmem [resolvable:$true] %s1078
          %1084 = dma.vmem_to_hbm [thread:$0]  %s1079, 512, %s1077, %s1035, 128, 512, 8
        $region52: #{tpu_custom_call.1} parent=31 // pred_fallthru
          _
        // Predicated region
        $region53: #{tpu_custom_call.1} parent=31 // pred_check
          %p1085 = pneg %p199
        $region54: #{tpu_custom_call.1} parent=31 // pred_check_branch
          %1087 = sbr.rel (%p1085) target = $region56
        $region55: #{tpu_custom_call.1} parent=31 // pred_region
          %s1088 = smul.u32 2, %s35
          %s1090 = ssub.s32 512, 512
          %1091 = vsyncadd %s1040, %s1090
          %s1092 = smul.addr %s1088, 8
          %s1093 = sadd.s32 %s36, %s1092
          %s1094 = smul.addr %s1093, 128
          %s1095 = scalar_lea.hbm %s5, %s1094
          %s1096 = sshll.u32 %s1043, 4
          %s1097 = int_to_ptr.vmem [resolvable:$true] %s1096
          %1102 = dma.vmem_to_hbm [thread:$0]  %s1097, 512, %s1095, %s1040, 128, 512, 8
        $region56: #{tpu_custom_call.1} parent=31 // pred_fallthru
          _
        // Predicated region
        $region57: #{tpu_custom_call.1} parent=31 // pred_check
          %p1103 = pneg %p227
        $region58: #{tpu_custom_call.1} parent=31 // pred_check_branch
          %1105 = sbr.rel (%p1103) target = $region60
        $region59: #{tpu_custom_call.1} parent=31 // pred_region
          %s1106 = smul.u32 2, %s35
          %s1108 = ssub.s32 512, 512
          %1109 = vsyncadd %s1045, %s1108
          %s1110 = smul.addr %s1106, 8
          %s1111 = sadd.s32 %s36, %s1110
          %s1112 = smul.addr %s1111, 128
          %s1113 = scalar_lea.hbm %s6, %s1112
          %s1114 = sshll.u32 %s1048, 4
          %s1115 = int_to_ptr.vmem [resolvable:$true] %s1114
          %1120 = dma.vmem_to_hbm [thread:$0]  %s1115, 512, %s1113, %s1045, 128, 512, 8
        $region60: #{tpu_custom_call.1} parent=31 // pred_fallthru
          _
      $region32: #{tpu_custom_call.1} parent=5 // pred_fallthru
        _
      %p1121 = scmp.le.s32.totalorder 2, %s26
      // Predicated region
      $region61: #{tpu_custom_call.1} parent=5 // pred_check
        %p1122 = pneg %p1121
      $region62: #{tpu_custom_call.1} parent=5 // pred_check_branch
        %1124 = sbr.rel (%p1122) target = $region64
      $region63: #{tpu_custom_call.1} parent=5 // pred_region
        %s1125 = ssub.s32 %s26, 2
        // Predicated region
        $region65: #{tpu_custom_call.1} parent=63 // pred_check
          %p1126 = pneg %p149
        $region66: #{tpu_custom_call.1} parent=63 // pred_check_branch
          %1128 = sbr.rel (%p1126) target = $region68
        $region67: #{tpu_custom_call.1} parent=63 // pred_region
          %s1129 = sand.u32 %s134, 1
          %s1130 = scalar_lea.sflag [#allocation4], %s1129
          %s1131 = sand.u32 %s134, 1
          %s1132 = smul.addr %s1131, 32
          %s1133 = scalar_lea.vmem [#allocation8], %s1132
          %1134 = dma.done %s1130, 512
        $region68: #{tpu_custom_call.1} parent=63 // pred_fallthru
          _
        // Predicated region
        $region69: #{tpu_custom_call.1} parent=63 // pred_check
          %p1135 = pneg %p177
        $region70: #{tpu_custom_call.1} parent=63 // pred_check_branch
          %1137 = sbr.rel (%p1135) target = $region72
        $region71: #{tpu_custom_call.1} parent=63 // pred_region
          %s1138 = sand.u32 %s32, 1
          %s1139 = scalar_lea.sflag [#allocation10], %s1138
          %s1140 = sand.u32 %s162, 1
          %s1141 = smul.addr %s1140, 32
          %s1142 = scalar_lea.vmem [#allocation9], %s1141
          %1143 = dma.done %s1139, 512
        $region72: #{tpu_custom_call.1} parent=63 // pred_fallthru
          _
        // Predicated region
        $region73: #{tpu_custom_call.1} parent=63 // pred_check
          %p1144 = pneg %p205
        $region74: #{tpu_custom_call.1} parent=63 // pred_check_branch
          %1146 = sbr.rel (%p1144) target = $region76
        $region75: #{tpu_custom_call.1} parent=63 // pred_region
          %s1147 = sand.u32 %s32, 1
          %s1148 = scalar_lea.sflag [#allocation10], %s1147
          %s1149 = sand.u32 %s190, 1
          %s1150 = smul.addr %s1149, 32
          %s1151 = scalar_lea.vmem [#allocation11], %s1150
          %1152 = dma.done %s1148, 512
        $region76: #{tpu_custom_call.1} parent=63 // pred_fallthru
          _
        // Predicated region
        $region77: #{tpu_custom_call.1} parent=63 // pred_check
          %p1153 = pneg %p233
        $region78: #{tpu_custom_call.1} parent=63 // pred_check_branch
          %1155 = sbr.rel (%p1153) target = $region80
        $region79: #{tpu_custom_call.1} parent=63 // pred_region
          %s1156 = sand.u32 %s218, 1
          %s1157 = scalar_lea.sflag [#allocation13], %s1156
          %s1158 = sand.u32 %s218, 1
          %s1159 = smul.addr %s1158, 32
          %s1160 = scalar_lea.vmem [#allocation12], %s1159
          %1161 = dma.done %s1157, 512
        $region80: #{tpu_custom_call.1} parent=63 // pred_fallthru
          _
      $region64: #{tpu_custom_call.1} parent=5 // pred_fallthru
        _
    $region6: #{tpu_custom_call.1} parent=1 // loop_footer
      %s30 = sadd.s32 1, %s26
    $region7: #{tpu_custom_call.1} parent=1 // loop_footer_branch
      %25 = sbr.rel target = $region3
    $region8: #{tpu_custom_call.1} parent=1 // loop_exit
      _
    %1162 = vsyncpa [#allocation3], 1
    %s1163 = scalar_lea.sflag [#allocation3], 1
    %1164 = vsyncpa %s1163, 1
    %1165 = vsyncpa [#allocation6], 1
    %1166 = vsyncpa [#allocation4], 1
    %s1167 = scalar_lea.sflag [#allocation4], 1
    %1168 = vsyncpa %s1167, 1
    %1169 = vsyncpa [#allocation10], 1
    %s1170 = scalar_lea.sflag [#allocation10], 1
    %1171 = vsyncpa %s1170, 1
    %1172 = vsyncpa [#allocation13], 1
    %s1173 = scalar_lea.sflag [#allocation13], 1
    %1174 = vsyncpa %s1173, 1

</llo_original>
